<compile_context>
chip_gen: v7x
topology: tpu7x:2x2x1
jax: 0.10.0
libtpu: 0.0.40
codegen_flags: <defaults>
</compile_context>

<pallas_src>
import jax
import jax.numpy as jnp
from jax.experimental import pallas as pl
from jax.experimental.pallas import tpu as pltpu


def attention_kernel(x_ref, wT_ref, b_ref, v_ref, o_ref):
    TB, S, D = x_ref.shape
    A = wT_ref.shape[1]

    x = x_ref[...]                               # (TB, S, D)
    wT = wT_ref[...]                             # (D, A)  pre-transposed in wrapper
    b = b_ref[...]                               # (1, A)  f32
    v = v_ref[...]                               # (1, A)  f32

    # --- H = tanh(x @ W^T + b) ------------------------------------------------
    itemsize = jnp.dtype(x_ref.dtype).itemsize
    pack = 8 if itemsize >= 4 else 32 // itemsize    # sublane pack (f32:8, bf16:16)
    if S % pack == 0:
        # One MXU matmul over all TB*S rows; reshape is layout-free here.
        h = jnp.dot(x.reshape(TB * S, D), wT,
                    preferred_element_type=jnp.float32,
                    precision=jax.lax.Precision.HIGHEST)
        h = jnp.tanh(h + b).reshape(TB, S, A)        # (TB, S, A), f32
    else:
        # Ragged S: avoid reshapes that would cross (8,128) tile boundaries
        # and materialize a VMEM repack of the x slab every grid step.
        h = jnp.einsum("bsd,da->bsa", x, wT,
                       preferred_element_type=jnp.float32,
                       precision=jax.lax.Precision.HIGHEST)
        h = jnp.tanh(h + b)

    # --- scores in lane-major (TB, S) layout + exact softmax over seq ---------
    s = jnp.sum(h * v, axis=-1)                  # (TB, S)
    s = s - jnp.max(s, axis=-1, keepdims=True)
    e = jnp.exp(s)
    p = e / jnp.sum(e, axis=-1, keepdims=True)   # exact normalization (matches ref)

    # --- pooled = sum_s p[b,s] * x[b,s,:]  (VPU broadcast-mul + sublane reduce)
    pooled = jnp.sum(x.astype(jnp.float32) * p[:, :, None], axis=1)   # (TB, D) f32
    o_ref[...] = pooled.astype(o_ref.dtype)      # lane-dense (TB, D) store


def _vmem_capacity_bytes():
    """Generation-aware VMEM capacity (128 MiB v5e/v6e, 64 MiB v7x), with a
    conservative fallback when running under the interpreter / off-TPU."""
    try:
        cap = int(pltpu.get_tpu_info().vmem_capacity_bytes)
        if cap > 0:
            return cap
    except Exception:
        pass
    return 64 * 1024 * 1024        # conservative (v7x-sized) fallback


def _estimate_vmem_bytes(tb, S, D, A, itemsize):
    x_blk = tb * S * D * itemsize          # input block (double-buffered)
    out_blk = tb * D * itemsize            # output block (double-buffered)
    h_f32 = tb * S * A * 4                 # tanh projection intermediate
    prod_f32 = tb * S * D * 4              # x*p product for the VPU pooling
    weights = D * A * 4 + 2 * A * 4        # wT + biases (grid-invariant)
    return 2 * x_blk + 2 * out_blk + h_f32 + prod_f32 + 2 * weights


def _pick_block_b(B, S, D, A, itemsize, vmem_limit_bytes):
    """Largest legal batch tile that fits the VMEM budget (the kernel is
    HBM-bandwidth-bound), capped so the grid keeps >=2 steps when possible
    (v7x has two TensorCores)."""
    budget = int(vmem_limit_bytes * 0.8)   # headroom for compiler scratch
    divs = [tb for tb in range(1, B + 1) if B % tb == 0]
    # Output block (tb, D): sublane dim must be a multiple of 8 or full extent.
    legal = [tb for tb in divs if tb == B or tb % 8 == 0]
    fits = [tb for tb in legal
            if _estimate_vmem_bytes(tb, S, D, A, itemsize) <= budget]
    if not fits:
        # TODO(synk): add an S-chunked (online-softmax) path for shapes whose
        # smallest legal batch tile still overflows VMEM.
        raise ValueError(
            f"Attention kernel: no legal batch tile fits VMEM "
            f"(B={B}, S={S}, D={D}, A={A}, vmem_limit={vmem_limit_bytes}).")
    multi_step = [tb for tb in fits if B // tb >= 2]
    return max(multi_step) if multi_step else max(fits)


def attention_forward(x, w, b, v, block_b=None):
    """x: (B, S, D); w: (A, D); b: (A,); v: (A,) -> (B, D)."""
    B, S, D = x.shape
    A = w.shape[0]
    itemsize = jnp.dtype(x.dtype).itemsize

    vmem_cap = _vmem_capacity_bytes()
    vmem_limit = (vmem_cap * 3) // 4       # ~96 MiB on v5e/v6e, ~48 MiB on v7x
    if block_b is None:
        block_b = _pick_block_b(B, S, D, A, itemsize, vmem_limit)
    assert B % block_b == 0

    wT = jnp.transpose(w).astype(jnp.float32)   # (D, A): transpose once, outside kernel
    b2 = jnp.reshape(b, (1, A)).astype(jnp.float32)
    v2 = jnp.reshape(v, (1, A)).astype(jnp.float32)

    return pl.pallas_call(
        attention_kernel,
        out_shape=jax.ShapeDtypeStruct((B, D), x.dtype),
        grid_spec=pltpu.PrefetchScalarGridSpec(
            num_scalar_prefetch=0,
            grid=(B // block_b,),
            in_specs=[
                pl.BlockSpec((block_b, S, D), lambda i: (i, 0, 0)),
                pl.BlockSpec((D, A), lambda i: (0, 0)),   # grid-invariant weight
                pl.BlockSpec((1, A), lambda i: (0, 0)),
                pl.BlockSpec((1, A), lambda i: (0, 0)),
            ],
            out_specs=pl.BlockSpec((block_b, D), lambda i: (i, 0)),
        ),
        compiler_params=pltpu.CompilerParams(
            # NOTE: on v7x, pltpu.CORE_PARALLEL on this axis would shard the
            # batch grid across the two TensorCores; "parallel" is portable.
            dimension_semantics=("parallel",),
            vmem_limit_bytes=int(vmem_limit),
        ),
    )(x, wT, b2, v2)


def attention_reference(x, w, b, v):
    h = jnp.tanh(
        jnp.einsum("bsd,ad->bsa", x, w, precision=jax.lax.Precision.HIGHEST) + b)
    s = jnp.einsum("bsa,a->bs", h, v,
                   precision=jax.lax.Precision.HIGHEST)[..., None]   # (B, S, 1)
    p = jax.nn.softmax(s, axis=1)
    return jnp.sum(x * p, axis=1)


if __name__ == "__main__":
    # Small shapes consistent with the module: batch=2, seq=8, hidden=32.
    B, S, D = 2, 8, 32
    A = D  # attention_dim defaults to hidden_dim

    key = jax.random.PRNGKey(0)
    kx, kw, kb, kv = jax.random.split(key, 4)

    x = jax.random.normal(kx, (B, S, D), dtype=jnp.float32)
    # Deterministic parameter init (synthetic, matching nn.Linear shapes).
    w = jax.random.normal(kw, (A, D), dtype=jnp.float32) * (1.0 / jnp.sqrt(D))
    b = jax.random.normal(kb, (A,), dtype=jnp.float32) * 0.01
    v = jax.random.normal(kv, (A,), dtype=jnp.float32) * (1.0 / jnp.sqrt(A))

    out = attention_forward(x, w, b, v)
    out = jax.block_until_ready(out)

    ref = attention_reference(x, w, b, v)
    assert out.shape == (B, D)
    assert jnp.allclose(out, ref, atol=1e-4, rtol=1e-4), float(
        jnp.max(jnp.abs(out - ref)))

    print("KERNEL_OK")
</pallas_src>

<mosaic_0001>
module attributes {stable_mosaic.version = 11 : i64} {
  func.func @attention_kernel(%arg0: i32, %arg1: memref<2x8x32xf32, #tpu.memory_space<vmem>>, %arg2: memref<32x32xf32, #tpu.memory_space<vmem>>, %arg3: memref<1x32xf32, #tpu.memory_space<vmem>>, %arg4: memref<1x32xf32, #tpu.memory_space<vmem>>, %arg5: memref<2x32xf32, #tpu.memory_space<vmem>>) attributes {dimension_semantics = [#tpu.dimension_semantics<parallel>], iteration_bounds = array<i64: 1>, scalar_prefetch = 0 : i64, scratch_operands = 0 : i64, tpu.core_type = #tpu.core_type<tc>, window_params = [{transform_indices = @transform_0, window_bounds = array<i64: 2, 8, 32>}, {pipeline_mode = #tpu.pipeline_mode<synchronous>, transform_indices = @transform_1, window_bounds = array<i64: 32, 32>}, {pipeline_mode = #tpu.pipeline_mode<synchronous>, transform_indices = @transform_2, window_bounds = array<i64: 1, 32>}, {pipeline_mode = #tpu.pipeline_mode<synchronous>, transform_indices = @transform_3, window_bounds = array<i64: 1, 32>}, {transform_indices = @transform_4, window_bounds = array<i64: 2, 32>}]} {
    %c0 = arith.constant 0 : index
    %c0_0 = arith.constant 0 : index
    %c0_1 = arith.constant 0 : index
    %0 = vector.load %arg1[%c0, %c0_0, %c0_1] : memref<2x8x32xf32, #tpu.memory_space<vmem>>, vector<2x8x32xf32>
    %c0_2 = arith.constant 0 : index
    %c0_3 = arith.constant 0 : index
    %1 = vector.load %arg2[%c0_2, %c0_3] : memref<32x32xf32, #tpu.memory_space<vmem>>, vector<32x32xf32>
    %c0_4 = arith.constant 0 : index
    %c0_5 = arith.constant 0 : index
    %2 = vector.load %arg3[%c0_4, %c0_5] : memref<1x32xf32, #tpu.memory_space<vmem>>, vector<1x32xf32>
    %c0_6 = arith.constant 0 : index
    %c0_7 = arith.constant 0 : index
    %3 = vector.load %arg4[%c0_6, %c0_7] : memref<1x32xf32, #tpu.memory_space<vmem>>, vector<1x32xf32>
    %4 = vector.shape_cast %0 : vector<2x8x32xf32> to vector<16x32xf32>
    %cst = arith.constant dense<0.000000e+00> : vector<16x32xf32>
    %5 = tpu.matmul %4, %1, %cst {dimension_numbers = #tpu.dot_dimension_numbers<[1], [0], [0], [1], [0, 0, 1, 1], [], []>, precision = #tpu.contract_precision<fp32>} : vector<16x32xf32>, vector<32x32xf32>, vector<16x32xf32> -> vector<16x32xf32>
    %6 = vector.broadcast %2 : vector<1x32xf32> to vector<16x32xf32>
    %7 = arith.addf %5, %6 : vector<16x32xf32>
    %8 = math.tanh %7 : vector<16x32xf32>
    %9 = vector.shape_cast %8 : vector<16x32xf32> to vector<2x8x32xf32>
    %10 = vector.shape_cast %3 : vector<1x32xf32> to vector<1x1x32xf32>
    %11 = vector.broadcast %10 : vector<1x1x32xf32> to vector<2x8x32xf32>
    %12 = arith.mulf %9, %11 : vector<2x8x32xf32>
    %cst_8 = arith.constant dense<0.000000e+00> : vector<2x8xf32>
    %13 = vector.multi_reduction <add>, %12, %cst_8 [2] : vector<2x8x32xf32> to vector<2x8xf32>
    %cst_9 = arith.constant dense<0xFF800000> : vector<2xf32>
    %14 = vector.multi_reduction <maximumf>, %13, %cst_9 [1] : vector<2x8xf32> to vector<2xf32>
    %15 = vector.shape_cast %14 : vector<2xf32> to vector<2x1xf32>
    %16 = vector.broadcast %15 : vector<2x1xf32> to vector<2x8xf32>
    %17 = arith.subf %13, %16 : vector<2x8xf32>
    %18 = math.exp %17 : vector<2x8xf32>
    %cst_10 = arith.constant dense<0.000000e+00> : vector<2xf32>
    %19 = vector.multi_reduction <add>, %18, %cst_10 [1] : vector<2x8xf32> to vector<2xf32>
    %20 = vector.shape_cast %19 : vector<2xf32> to vector<2x1xf32>
    %21 = vector.broadcast %20 : vector<2x1xf32> to vector<2x8xf32>
    %22 = arith.divf %18, %21 : vector<2x8xf32>
    %23 = vector.shape_cast %22 : vector<2x8xf32> to vector<2x8x1xf32>
    %24 = vector.broadcast %23 : vector<2x8x1xf32> to vector<2x8x32xf32>
    %25 = arith.mulf %0, %24 : vector<2x8x32xf32>
    %cst_11 = arith.constant dense<0.000000e+00> : vector<2x32xf32>
    %26 = vector.multi_reduction <add>, %25, %cst_11 [1] : vector<2x8x32xf32> to vector<2x32xf32>
    %c0_12 = arith.constant 0 : index
    %c0_13 = arith.constant 0 : index
    %27 = vector.load %arg5[%c0_12, %c0_13] : memref<2x32xf32, #tpu.memory_space<vmem>>, vector<2x32xf32>
    tpu.vector_store %arg5[%c0_12, %c0_13], %26 {strides = array<i32>} : memref<2x32xf32, #tpu.memory_space<vmem>>, vector<2x32xf32>,
    return
  }
  func.func @transform_0(%arg0: i32) -> (i32, i32, i32) {
    %c0_i32 = arith.constant 0 : i32
    %c0_i32_0 = arith.constant 0 : i32
    %c0_i32_1 = arith.constant 0 : i32
    return %arg0, %c0_i32, %c0_i32_0 : i32, i32, i32
  }
  func.func @transform_1(%arg0: i32) -> (i32, i32) {
    %c0_i32 = arith.constant 0 : i32
    %c0_i32_0 = arith.constant 0 : i32
    %c0_i32_1 = arith.constant 0 : i32
    return %c0_i32, %c0_i32_0 : i32, i32
  }
  func.func @transform_2(%arg0: i32) -> (i32, i32) {
    %c0_i32 = arith.constant 0 : i32
    %c0_i32_0 = arith.constant 0 : i32
    %c0_i32_1 = arith.constant 0 : i32
    return %c0_i32, %c0_i32_0 : i32, i32
  }
  func.func @transform_3(%arg0: i32) -> (i32, i32) {
    %c0_i32 = arith.constant 0 : i32
    %c0_i32_0 = arith.constant 0 : i32
    %c0_i32_1 = arith.constant 0 : i32
    return %c0_i32, %c0_i32_0 : i32, i32
  }
  func.func @transform_4(%arg0: i32) -> (i32, i32) {
    %c0_i32 = arith.constant 0 : i32
    %c0_i32_0 = arith.constant 0 : i32
    return %arg0, %c0_i32 : i32, i32
  }
}

</mosaic_0001>

<llo_original>
// kernel: tpu_custom_call.1
$region0: #{tpu_custom_call.1}
  #allocation0 [shape = 'u32[]', space=smem, size = 0x4, offset = 0x4, fixed_abs, tag = 'smem constant byte address 0x4 - core index']
  #allocation1 [shape = 'u32[144,128]{1,0:T(1,128)}', space=vmem, size = 0x12000, scoped, tag = 'internal scratch']
  %s0 = inlined_call_operand.hbm [shape: f32[2,8,32], index: 0, kind: input, shape index: {}]
  %s1 = inlined_call_operand.hbm [shape: f32[32,32], index: 1, kind: input, shape index: {}]
  %s2 = inlined_call_operand.vmem [shape: f32[1,32], index: 2, kind: input, shape index: {}]
  %s3 = inlined_call_operand.vmem [shape: f32[1,32], index: 3, kind: input, shape index: {}]
  %s4 = inlined_call_operand.hbm [shape: f32[2,32], index: 4, kind: output, shape index: {}]
  %s5 = sld [smem:[#allocation0]]
  $region34: #{tpu_custom_call.1} parent=0
    _
  %s7 = ssub.s32 1, %s5
  %s8 = scalar_select 0, %s7, %s5
  $region1: #{tpu_custom_call.1} parent=0
    #allocation2 [shape = 'u8[8192]{0}', space=vmem, size = 0x2000, scoped, tag = 'input window, operand 0, single buffered']
    #allocation3 [shape = 's32[1]{0}', space=sflag, size = 0x4, scoped, tag = 'scoped memory for tpu_custom_call.1']
    #allocation4 [shape = 's32[1]{0}', space=sflag, size = 0x4, scoped, tag = 'scoped memory for tpu_custom_call.1']
    #allocation5 [shape = 'u8[16384]{0}', space=vmem, size = 0x4000, scoped, tag = 'input window, operand 1, single buffered']
    #allocation6 [shape = 's32[1]{0}', space=sflag, size = 0x4, scoped, tag = 'scoped memory for tpu_custom_call.1']
    #allocation7 [shape = 'u8[1024]{0}', space=vmem, size = 0x400, scoped, tag = 'output window, operand 0, single buffered']
    %9 = vsyncpa [#allocation3], 0
    %10 = vsyncpa [#allocation6], 0
    %11 = vsyncpa [#allocation4], 0
    // Predicated region
    $region2: #{tpu_custom_call.1} parent=1 // pred_check
      _
    $region3: #{tpu_custom_call.1} parent=1 // pred_check_branch
      %13 = sbr.rel (0) target = $region5
    $region4: #{tpu_custom_call.1} parent=1 // pred_region
      %s15 = ssub.s32 256, 256
      %16 = vsyncadd [#allocation3], %s15
      %s17 = sshll.u32 [#allocation2], 4
      %s18 = int_to_ptr.vmem [resolvable:$true] %s17
      %23 = dma.hbm_to_vmem [thread:$0]  %s0, 256, %s18, [#allocation3], 128, 128, 8
    $region5: #{tpu_custom_call.1} parent=1 // pred_fallthru
      _
    // Predicated region
    $region6: #{tpu_custom_call.1} parent=1 // pred_check
      _
    $region7: #{tpu_custom_call.1} parent=1 // pred_check_branch
      %25 = sbr.rel (0) target = $region9
    $region8: #{tpu_custom_call.1} parent=1 // pred_region
      %s27 = ssub.s32 512, 512
      %28 = vsyncadd [#allocation6], %s27
      %s29 = sshll.u32 [#allocation5], 4
      %s30 = int_to_ptr.vmem [resolvable:$true] %s29
      %35 = dma.hbm_to_vmem [thread:$0]  %s1, 512, %s30, [#allocation6], 128, 128, 8
    $region9: #{tpu_custom_call.1} parent=1 // pred_fallthru
      _
    // Predicated region
    $region10: #{tpu_custom_call.1} parent=1 // pred_check
      _
    $region11: #{tpu_custom_call.1} parent=1 // pred_check_branch
      %37 = sbr.rel (0) target = $region13
    $region12: #{tpu_custom_call.1} parent=1 // pred_region
      _
    $region13: #{tpu_custom_call.1} parent=1 // pred_fallthru
      _
    // Predicated region
    $region14: #{tpu_custom_call.1} parent=1 // pred_check
      _
    $region15: #{tpu_custom_call.1} parent=1 // pred_check_branch
      %39 = sbr.rel (0) target = $region17
    $region16: #{tpu_custom_call.1} parent=1 // pred_region
      _
    $region17: #{tpu_custom_call.1} parent=1 // pred_fallthru
      _
    // Predicated region
    $region18: #{tpu_custom_call.1} parent=1 // pred_check
      _
    $region19: #{tpu_custom_call.1} parent=1 // pred_check_branch
      %41 = sbr.rel (0) target = $region21
    $region20: #{tpu_custom_call.1} parent=1 // pred_region
      %42 = dma.done [#allocation3], 256
    $region21: #{tpu_custom_call.1} parent=1 // pred_fallthru
      _
    // Predicated region
    $region22: #{tpu_custom_call.1} parent=1 // pred_check
      _
    $region23: #{tpu_custom_call.1} parent=1 // pred_check_branch
      %44 = sbr.rel (0) target = $region25
    $region24: #{tpu_custom_call.1} parent=1 // pred_region
      %45 = dma.done [#allocation6], 512
    $region25: #{tpu_custom_call.1} parent=1 // pred_fallthru
      _
    %v46 = vld [vmem:[#allocation2] sm:$0xff]
    %v47 = vld [vmem:[#allocation2 + $0x8] sm:$0xff]
    %v48 = vld [vmem:[#allocation5] sm:$0xff]
    %v49 = vld [vmem:[#allocation5 + $0x8] sm:$0xff]
    %v50 = vld [vmem:[#allocation5 + $0x10] sm:$0xff]
    %v51 = vld [vmem:[#allocation5 + $0x18] sm:$0xff]
    %v52 = vld [vmem:[%s2] sm:$0x1]
    %v53 = vld [vmem:[%s3] sm:$0x1]
    %v55 = vlaneseq
    %v56 = vshrl.u32 %v55, 7
    %v57 = vsub.s32 0, %v56
    %v58 = vrot.slane %v52, %v57
    %vm60 = vcmask 261120
    %v62 = vsel %vm60, %v46, 0
    %v65 = vsel %vm60, %v47, 0
    %67 = vmatprep.subr.mxu0 0.0
    %v68 = vand.u32 %v48, 4294901760
    %69 = vmatpush1.msra.mxu0 %v68
    %70 = vmatprep.subr.mxu0 0.0
    %v71 = vand.u32 %v49, 4294901760
    %72 = vmatpush1.msra.mxu0 %v71
    %73 = vmatprep.subr.mxu0 0.0
    %v74 = vand.u32 %v50, 4294901760
    %75 = vmatpush1.msra.mxu0 %v74
    %76 = vmatprep.subr.mxu0 0.0
    %v77 = vand.u32 %v51, 4294901760
    %78 = vmatpush1.msra.mxu0 %v77
    %79 = vmatprep.subr.mxu0 0.0
    %80 = vmatpush1.msra.mxu0 0.0
    %81 = vmatprep.subr.mxu0 0.0
    %82 = vmatpush1.msra.mxu0 0.0
    %83 = vmatprep.subr.mxu0 0.0
    %84 = vmatpush1.msra.mxu0 0.0
    %85 = vmatprep.subr.mxu0 0.0
    %86 = vmatpush1.msra.mxu0 0.0
    %87 = vmatprep.subr.mxu0 0.0
    %88 = vmatpush1.msra.mxu0 0.0
    %89 = vmatprep.subr.mxu0 0.0
    %90 = vmatpush1.msra.mxu0 0.0
    %91 = vmatprep.subr.mxu0 0.0
    %92 = vmatpush1.msra.mxu0 0.0
    %93 = vmatprep.subr.mxu0 0.0
    %94 = vmatpush1.msra.mxu0 0.0
    %95 = vmatprep.subr.mxu0 0.0
    %96 = vmatpush1.msra.mxu0 0.0
    %97 = vmatprep.subr.mxu0 0.0
    %98 = vmatpush1.msra.mxu0 0.0
    %99 = vmatprep.subr.mxu0 0.0
    %100 = vmatpush1.msra.mxu0 0.0
    %101 = vmatprep.subr.mxu0 0.0
    %102 = vmatpush1.msra.mxu0 0.0
    %103 = vmatprep.subr.mxu0 0.0
    %104 = vmatpush1.msra.mxu0 0.0
    %105 = vmatprep.subr.mxu0 0.0
    %106 = vmatpush1.msra.mxu0 0.0
    %107 = vmatprep.subr.mxu0 0.0
    %108 = vmatpush1.msra.mxu0 0.0
    %109 = vmatprep.subr.mxu0 0.0
    %110 = vmatpush1.msra.mxu0 0.0
    %111 = vmatprep.subr.mxu0 0.0
    %112 = vmatpush1.msra.mxu0 0.0
    %113 = vmatprep.subr.mxu0 0.0
    %114 = vmatpush1.msra.mxu0 0.0
    %115 = vmatprep.subr.mxu0 0.0
    %116 = vmatpush1.msra.mxu0 0.0
    %117 = vmatprep.subr.mxu0 0.0
    %118 = vmatpush1.msra.mxu0 0.0
    %119 = vmatprep.subr.mxu0 0.0
    %120 = vmatpush1.msra.mxu0 0.0
    %121 = vmatprep.subr.mxu0 0.0
    %122 = vmatpush1.msra.mxu0 0.0
    %123 = vmatprep.subr.mxu0 0.0
    %124 = vmatpush1.msra.mxu0 0.0
    %125 = vmatprep.subr.mxu0 0.0
    %126 = vmatpush1.msra.mxu0 0.0
    %127 = vmatprep.subr.mxu0 0.0
    %128 = vmatpush1.msra.mxu0 0.0
    %129 = vmatprep.subr.mxu0 0.0
    %130 = vmatpush1.msra.mxu0 0.0
    %131 = vmatprep.subr.mxu0 0.0
    %132 = vmatpush1.msra.mxu0 0.0
    %133 = vmatprep.subr.mxu0 0.0
    %134 = vmatpush1.msra.mxu0 0.0
    %135 = vmatprep.mubr.f32.mxu0 0.0
    %v136 = vand.u32 %v62, 4294901760
    %v137 = vsub.f32 %v62, %v136
    %v138 = vand.u32 %v137, 4294901760
    %v139 = vsub.f32 %v137, %v138
    %v140 = vand.u32 %v139, 4294901760
    %141 = vmatmul.mubr.f32.gmra.mrb[0].mxu0 %v140
    %v142 = vpop.f32.mrb[0].mxu0
    %v143 = vadd.f32 %v58, %v142
    %v144 = vpop.f32.mrb[0].mxu0
    %145 = vmatprep.mubr.f32.mxu0 0.0
    %v146 = vand.u32 %v65, 4294901760
    %v147 = vsub.f32 %v65, %v146
    %v148 = vand.u32 %v147, 4294901760
    %v149 = vsub.f32 %v147, %v148
    %v150 = vand.u32 %v149, 4294901760
    %151 = vmatmul.mubr.f32.gmra.mrb[0].mxu0 %v150
    %v152 = vpop.f32.mrb[0].mxu0
    %v153 = vadd.f32 %v58, %v152
    %v154 = vpop.f32.mrb[0].mxu0
    %155 = vdwg.mxu0
    %156 = vmatprep.subr.mxu0 0.0
    %v157 = vand.u32 %v48, 4294901760
    %v158 = vsub.f32 %v48, %v157
    %v159 = vand.u32 %v158, 4294901760
    %v160 = vsub.f32 %v158, %v159
    %v161 = vand.u32 %v160, 4294901760
    %162 = vmatpush1.msra.mxu0 %v161
    %163 = vmatprep.subr.mxu0 0.0
    %v164 = vand.u32 %v49, 4294901760
    %v165 = vsub.f32 %v49, %v164
    %v166 = vand.u32 %v165, 4294901760
    %v167 = vsub.f32 %v165, %v166
    %v168 = vand.u32 %v167, 4294901760
    %169 = vmatpush1.msra.mxu0 %v168
    %170 = vmatprep.subr.mxu0 0.0
    %v171 = vand.u32 %v50, 4294901760
    %v172 = vsub.f32 %v50, %v171
    %v173 = vand.u32 %v172, 4294901760
    %v174 = vsub.f32 %v172, %v173
    %v175 = vand.u32 %v174, 4294901760
    %176 = vmatpush1.msra.mxu0 %v175
    %177 = vmatprep.subr.mxu0 0.0
    %v178 = vand.u32 %v51, 4294901760
    %v179 = vsub.f32 %v51, %v178
    %v180 = vand.u32 %v179, 4294901760
    %v181 = vsub.f32 %v179, %v180
    %v182 = vand.u32 %v181, 4294901760
    %183 = vmatpush1.msra.mxu0 %v182
    %184 = vmatprep.subr.mxu0 0.0
    %185 = vmatpush1.msra.mxu0 0.0
    %186 = vmatprep.subr.mxu0 0.0
    %187 = vmatpush1.msra.mxu0 0.0
    %188 = vmatprep.subr.mxu0 0.0
    %189 = vmatpush1.msra.mxu0 0.0
    %190 = vmatprep.subr.mxu0 0.0
    %191 = vmatpush1.msra.mxu0 0.0
    %192 = vmatprep.subr.mxu0 0.0
    %193 = vmatpush1.msra.mxu0 0.0
    %194 = vmatprep.subr.mxu0 0.0
    %195 = vmatpush1.msra.mxu0 0.0
    %196 = vmatprep.subr.mxu0 0.0
    %197 = vmatpush1.msra.mxu0 0.0
    %198 = vmatprep.subr.mxu0 0.0
    %199 = vmatpush1.msra.mxu0 0.0
    %200 = vmatprep.subr.mxu0 0.0
    %201 = vmatpush1.msra.mxu0 0.0
    %202 = vmatprep.subr.mxu0 0.0
    %203 = vmatpush1.msra.mxu0 0.0
    %204 = vmatprep.subr.mxu0 0.0
    %205 = vmatpush1.msra.mxu0 0.0
    %206 = vmatprep.subr.mxu0 0.0
    %207 = vmatpush1.msra.mxu0 0.0
    %208 = vmatprep.subr.mxu0 0.0
    %209 = vmatpush1.msra.mxu0 0.0
    %210 = vmatprep.subr.mxu0 0.0
    %211 = vmatpush1.msra.mxu0 0.0
    %212 = vmatprep.subr.mxu0 0.0
    %213 = vmatpush1.msra.mxu0 0.0
    %214 = vmatprep.subr.mxu0 0.0
    %215 = vmatpush1.msra.mxu0 0.0
    %216 = vmatprep.subr.mxu0 0.0
    %217 = vmatpush1.msra.mxu0 0.0
    %218 = vmatprep.subr.mxu0 0.0
    %219 = vmatpush1.msra.mxu0 0.0
    %220 = vmatprep.subr.mxu0 0.0
    %221 = vmatpush1.msra.mxu0 0.0
    %222 = vmatprep.subr.mxu0 0.0
    %223 = vmatpush1.msra.mxu0 0.0
    %224 = vmatprep.subr.mxu0 0.0
    %225 = vmatpush1.msra.mxu0 0.0
    %226 = vmatprep.subr.mxu0 0.0
    %227 = vmatpush1.msra.mxu0 0.0
    %228 = vmatprep.subr.mxu0 0.0
    %229 = vmatpush1.msra.mxu0 0.0
    %230 = vmatprep.subr.mxu0 0.0
    %231 = vmatpush1.msra.mxu0 0.0
    %232 = vmatprep.subr.mxu0 0.0
    %233 = vmatpush1.msra.mxu0 0.0
    %234 = vmatprep.subr.mxu0 0.0
    %235 = vmatpush1.msra.mxu0 0.0
    %236 = vmatprep.subr.mxu0 0.0
    %237 = vmatpush1.msra.mxu0 0.0
    %238 = vmatprep.subr.mxu0 0.0
    %239 = vmatpush1.msra.mxu0 0.0
    %240 = vmatprep.mubr.f32.mxu0 0.0
    %v241 = vand.u32 %v62, 4294901760
    %242 = vmatmul.mubr.f32.gmra.mrb[0].mxu0 %v241
    %v243 = vpop.f32.mrb[0].mxu0
    %v244 = vadd.f32 %v143, %v243
    %v245 = vpop.f32.mrb[0].mxu0
    %246 = vmatprep.mubr.f32.mxu0 0.0
    %v247 = vand.u32 %v65, 4294901760
    %248 = vmatmul.mubr.f32.gmra.mrb[0].mxu0 %v247
    %v249 = vpop.f32.mrb[0].mxu0
    %v250 = vadd.f32 %v153, %v249
    %v251 = vpop.f32.mrb[0].mxu0
    %252 = vdwg.mxu0
    %253 = vmatprep.subr.mxu0 0.0
    %v254 = vand.u32 %v48, 4294901760
    %v255 = vsub.f32 %v48, %v254
    %256 = vmatpush1.msra.mxu0 %v255
    %257 = vmatprep.subr.mxu0 0.0
    %v258 = vand.u32 %v49, 4294901760
    %v259 = vsub.f32 %v49, %v258
    %260 = vmatpush1.msra.mxu0 %v259
    %261 = vmatprep.subr.mxu0 0.0
    %v262 = vand.u32 %v50, 4294901760
    %v263 = vsub.f32 %v50, %v262
    %264 = vmatpush1.msra.mxu0 %v263
    %265 = vmatprep.subr.mxu0 0.0
    %v266 = vand.u32 %v51, 4294901760
    %v267 = vsub.f32 %v51, %v266
    %268 = vmatpush1.msra.mxu0 %v267
    %269 = vmatprep.subr.mxu0 0.0
    %270 = vmatpush1.msra.mxu0 0.0
    %271 = vmatprep.subr.mxu0 0.0
    %272 = vmatpush1.msra.mxu0 0.0
    %273 = vmatprep.subr.mxu0 0.0
    %274 = vmatpush1.msra.mxu0 0.0
    %275 = vmatprep.subr.mxu0 0.0
    %276 = vmatpush1.msra.mxu0 0.0
    %277 = vmatprep.subr.mxu0 0.0
    %278 = vmatpush1.msra.mxu0 0.0
    %279 = vmatprep.subr.mxu0 0.0
    %280 = vmatpush1.msra.mxu0 0.0
    %281 = vmatprep.subr.mxu0 0.0
    %282 = vmatpush1.msra.mxu0 0.0
    %283 = vmatprep.subr.mxu0 0.0
    %284 = vmatpush1.msra.mxu0 0.0
    %285 = vmatprep.subr.mxu0 0.0
    %286 = vmatpush1.msra.mxu0 0.0
    %287 = vmatprep.subr.mxu0 0.0
    %288 = vmatpush1.msra.mxu0 0.0
    %289 = vmatprep.subr.mxu0 0.0
    %290 = vmatpush1.msra.mxu0 0.0
    %291 = vmatprep.subr.mxu0 0.0
    %292 = vmatpush1.msra.mxu0 0.0
    %293 = vmatprep.subr.mxu0 0.0
    %294 = vmatpush1.msra.mxu0 0.0
    %295 = vmatprep.subr.mxu0 0.0
    %296 = vmatpush1.msra.mxu0 0.0
    %297 = vmatprep.subr.mxu0 0.0
    %298 = vmatpush1.msra.mxu0 0.0
    %299 = vmatprep.subr.mxu0 0.0
    %300 = vmatpush1.msra.mxu0 0.0
    %301 = vmatprep.subr.mxu0 0.0
    %302 = vmatpush1.msra.mxu0 0.0
    %303 = vmatprep.subr.mxu0 0.0
    %304 = vmatpush1.msra.mxu0 0.0
    %305 = vmatprep.subr.mxu0 0.0
    %306 = vmatpush1.msra.mxu0 0.0
    %307 = vmatprep.subr.mxu0 0.0
    %308 = vmatpush1.msra.mxu0 0.0
    %309 = vmatprep.subr.mxu0 0.0
    %310 = vmatpush1.msra.mxu0 0.0
    %311 = vmatprep.subr.mxu0 0.0
    %312 = vmatpush1.msra.mxu0 0.0
    %313 = vmatprep.subr.mxu0 0.0
    %314 = vmatpush1.msra.mxu0 0.0
    %315 = vmatprep.subr.mxu0 0.0
    %316 = vmatpush1.msra.mxu0 0.0
    %317 = vmatprep.subr.mxu0 0.0
    %318 = vmatpush1.msra.mxu0 0.0
    %319 = vmatprep.subr.mxu0 0.0
    %320 = vmatpush1.msra.mxu0 0.0
    %321 = vmatprep.subr.mxu0 0.0
    %322 = vmatpush1.msra.mxu0 0.0
    %323 = vmatprep.subr.mxu0 0.0
    %324 = vmatpush1.msra.mxu0 0.0
    %325 = vmatprep.mubr.f32.mxu0 0.0
    %v326 = vand.u32 %v62, 4294901760
    %v327 = vsub.f32 %v62, %v326
    %328 = vmatmul.mubr.f32.gmra.mrb[0].mxu0 %v327
    %v329 = vpop.f32.mrb[0].mxu0
    %v330 = vadd.f32 %v244, %v329
    %v331 = vpop.f32.mrb[0].mxu0
    %332 = vmatprep.mubr.f32.mxu0 0.0
    %v333 = vand.u32 %v65, 4294901760
    %v334 = vsub.f32 %v65, %v333
    %335 = vmatmul.mubr.f32.gmra.mrb[0].mxu0 %v334
    %v336 = vpop.f32.mrb[0].mxu0
    %v337 = vadd.f32 %v250, %v336
    %v338 = vpop.f32.mrb[0].mxu0
    %339 = vdwg.mxu0
    %340 = vmatprep.subr.mxu0 0.0
    %v341 = vand.u32 %v48, 4294901760
    %342 = vmatpush1.msra.mxu0 %v341
    %343 = vmatprep.subr.mxu0 0.0
    %v344 = vand.u32 %v49, 4294901760
    %345 = vmatpush1.msra.mxu0 %v344
    %346 = vmatprep.subr.mxu0 0.0
    %v347 = vand.u32 %v50, 4294901760
    %348 = vmatpush1.msra.mxu0 %v347
    %349 = vmatprep.subr.mxu0 0.0
    %v350 = vand.u32 %v51, 4294901760
    %351 = vmatpush1.msra.mxu0 %v350
    %352 = vmatprep.subr.mxu0 0.0
    %353 = vmatpush1.msra.mxu0 0.0
    %354 = vmatprep.subr.mxu0 0.0
    %355 = vmatpush1.msra.mxu0 0.0
    %356 = vmatprep.subr.mxu0 0.0
    %357 = vmatpush1.msra.mxu0 0.0
    %358 = vmatprep.subr.mxu0 0.0
    %359 = vmatpush1.msra.mxu0 0.0
    %360 = vmatprep.subr.mxu0 0.0
    %361 = vmatpush1.msra.mxu0 0.0
    %362 = vmatprep.subr.mxu0 0.0
    %363 = vmatpush1.msra.mxu0 0.0
    %364 = vmatprep.subr.mxu0 0.0
    %365 = vmatpush1.msra.mxu0 0.0
    %366 = vmatprep.subr.mxu0 0.0
    %367 = vmatpush1.msra.mxu0 0.0
    %368 = vmatprep.subr.mxu0 0.0
    %369 = vmatpush1.msra.mxu0 0.0
    %370 = vmatprep.subr.mxu0 0.0
    %371 = vmatpush1.msra.mxu0 0.0
    %372 = vmatprep.subr.mxu0 0.0
    %373 = vmatpush1.msra.mxu0 0.0
    %374 = vmatprep.subr.mxu0 0.0
    %375 = vmatpush1.msra.mxu0 0.0
    %376 = vmatprep.subr.mxu0 0.0
    %377 = vmatpush1.msra.mxu0 0.0
    %378 = vmatprep.subr.mxu0 0.0
    %379 = vmatpush1.msra.mxu0 0.0
    %380 = vmatprep.subr.mxu0 0.0
    %381 = vmatpush1.msra.mxu0 0.0
    %382 = vmatprep.subr.mxu0 0.0
    %383 = vmatpush1.msra.mxu0 0.0
    %384 = vmatprep.subr.mxu0 0.0
    %385 = vmatpush1.msra.mxu0 0.0
    %386 = vmatprep.subr.mxu0 0.0
    %387 = vmatpush1.msra.mxu0 0.0
    %388 = vmatprep.subr.mxu0 0.0
    %389 = vmatpush1.msra.mxu0 0.0
    %390 = vmatprep.subr.mxu0 0.0
    %391 = vmatpush1.msra.mxu0 0.0
    %392 = vmatprep.subr.mxu0 0.0
    %393 = vmatpush1.msra.mxu0 0.0
    %394 = vmatprep.subr.mxu0 0.0
    %395 = vmatpush1.msra.mxu0 0.0
    %396 = vmatprep.subr.mxu0 0.0
    %397 = vmatpush1.msra.mxu0 0.0
    %398 = vmatprep.subr.mxu0 0.0
    %399 = vmatpush1.msra.mxu0 0.0
    %400 = vmatprep.subr.mxu0 0.0
    %401 = vmatpush1.msra.mxu0 0.0
    %402 = vmatprep.subr.mxu0 0.0
    %403 = vmatpush1.msra.mxu0 0.0
    %404 = vmatprep.subr.mxu0 0.0
    %405 = vmatpush1.msra.mxu0 0.0
    %406 = vmatprep.subr.mxu0 0.0
    %407 = vmatpush1.msra.mxu0 0.0
    %408 = vmatprep.mubr.f32.mxu0 0.0
    %v409 = vand.u32 %v62, 4294901760
    %v410 = vsub.f32 %v62, %v409
    %v411 = vand.u32 %v410, 4294901760
    %412 = vmatmul.mubr.f32.gmra.mrb[0].mxu0 %v411
    %v413 = vpop.f32.mrb[0].mxu0
    %v414 = vadd.f32 %v330, %v413
    %v415 = vpop.f32.mrb[0].mxu0
    %416 = vmatprep.mubr.f32.mxu0 0.0
    %v417 = vand.u32 %v65, 4294901760
    %v418 = vsub.f32 %v65, %v417
    %v419 = vand.u32 %v418, 4294901760
    %420 = vmatmul.mubr.f32.gmra.mrb[0].mxu0 %v419
    %v421 = vpop.f32.mrb[0].mxu0
    %v422 = vadd.f32 %v337, %v421
    %v423 = vpop.f32.mrb[0].mxu0
    %424 = vdwg.mxu0
    %425 = vmatprep.subr.mxu0 0.0
    %v426 = vand.u32 %v48, 4294901760
    %v427 = vsub.f32 %v48, %v426
    %v428 = vand.u32 %v427, 4294901760
    %429 = vmatpush1.msra.mxu0 %v428
    %430 = vmatprep.subr.mxu0 0.0
    %v431 = vand.u32 %v49, 4294901760
    %v432 = vsub.f32 %v49, %v431
    %v433 = vand.u32 %v432, 4294901760
    %434 = vmatpush1.msra.mxu0 %v433
    %435 = vmatprep.subr.mxu0 0.0
    %v436 = vand.u32 %v50, 4294901760
    %v437 = vsub.f32 %v50, %v436
    %v438 = vand.u32 %v437, 4294901760
    %439 = vmatpush1.msra.mxu0 %v438
    %440 = vmatprep.subr.mxu0 0.0
    %v441 = vand.u32 %v51, 4294901760
    %v442 = vsub.f32 %v51, %v441
    %v443 = vand.u32 %v442, 4294901760
    %444 = vmatpush1.msra.mxu0 %v443
    %445 = vmatprep.subr.mxu0 0.0
    %446 = vmatpush1.msra.mxu0 0.0
    %447 = vmatprep.subr.mxu0 0.0
    %448 = vmatpush1.msra.mxu0 0.0
    %449 = vmatprep.subr.mxu0 0.0
    %450 = vmatpush1.msra.mxu0 0.0
    %451 = vmatprep.subr.mxu0 0.0
    %452 = vmatpush1.msra.mxu0 0.0
    %453 = vmatprep.subr.mxu0 0.0
    %454 = vmatpush1.msra.mxu0 0.0
    %455 = vmatprep.subr.mxu0 0.0
    %456 = vmatpush1.msra.mxu0 0.0
    %457 = vmatprep.subr.mxu0 0.0
    %458 = vmatpush1.msra.mxu0 0.0
    %459 = vmatprep.subr.mxu0 0.0
    %460 = vmatpush1.msra.mxu0 0.0
    %461 = vmatprep.subr.mxu0 0.0
    %462 = vmatpush1.msra.mxu0 0.0
    %463 = vmatprep.subr.mxu0 0.0
    %464 = vmatpush1.msra.mxu0 0.0
    %465 = vmatprep.subr.mxu0 0.0
    %466 = vmatpush1.msra.mxu0 0.0
    %467 = vmatprep.subr.mxu0 0.0
    %468 = vmatpush1.msra.mxu0 0.0
    %469 = vmatprep.subr.mxu0 0.0
    %470 = vmatpush1.msra.mxu0 0.0
    %471 = vmatprep.subr.mxu0 0.0
    %472 = vmatpush1.msra.mxu0 0.0
    %473 = vmatprep.subr.mxu0 0.0
    %474 = vmatpush1.msra.mxu0 0.0
    %475 = vmatprep.subr.mxu0 0.0
    %476 = vmatpush1.msra.mxu0 0.0
    %477 = vmatprep.subr.mxu0 0.0
    %478 = vmatpush1.msra.mxu0 0.0
    %479 = vmatprep.subr.mxu0 0.0
    %480 = vmatpush1.msra.mxu0 0.0
    %481 = vmatprep.subr.mxu0 0.0
    %482 = vmatpush1.msra.mxu0 0.0
    %483 = vmatprep.subr.mxu0 0.0
    %484 = vmatpush1.msra.mxu0 0.0
    %485 = vmatprep.subr.mxu0 0.0
    %486 = vmatpush1.msra.mxu0 0.0
    %487 = vmatprep.subr.mxu0 0.0
    %488 = vmatpush1.msra.mxu0 0.0
    %489 = vmatprep.subr.mxu0 0.0
    %490 = vmatpush1.msra.mxu0 0.0
    %491 = vmatprep.subr.mxu0 0.0
    %492 = vmatpush1.msra.mxu0 0.0
    %493 = vmatprep.subr.mxu0 0.0
    %494 = vmatpush1.msra.mxu0 0.0
    %495 = vmatprep.subr.mxu0 0.0
    %496 = vmatpush1.msra.mxu0 0.0
    %497 = vmatprep.subr.mxu0 0.0
    %498 = vmatpush1.msra.mxu0 0.0
    %499 = vmatprep.subr.mxu0 0.0
    %500 = vmatpush1.msra.mxu0 0.0
    %501 = vmatprep.mubr.f32.mxu0 0.0
    %v502 = vand.u32 %v62, 4294901760
    %503 = vmatmul.mubr.f32.gmra.mrb[0].mxu0 %v502
    %v504 = vpop.f32.mrb[0].mxu0
    %v505 = vadd.f32 %v414, %v504
    %v506 = vpop.f32.mrb[0].mxu0
    %507 = vmatprep.mubr.f32.mxu0 0.0
    %v508 = vand.u32 %v65, 4294901760
    %509 = vmatmul.mubr.f32.gmra.mrb[0].mxu0 %v508
    %v510 = vpop.f32.mrb[0].mxu0
    %v511 = vadd.f32 %v422, %v510
    %v512 = vpop.f32.mrb[0].mxu0
    %513 = vdwg.mxu0
    %514 = vmatprep.subr.mxu0 0.0
    %v515 = vand.u32 %v48, 4294901760
    %516 = vmatpush1.msra.mxu0 %v515
    %517 = vmatprep.subr.mxu0 0.0
    %v518 = vand.u32 %v49, 4294901760
    %519 = vmatpush1.msra.mxu0 %v518
    %520 = vmatprep.subr.mxu0 0.0
    %v521 = vand.u32 %v50, 4294901760
    %522 = vmatpush1.msra.mxu0 %v521
    %523 = vmatprep.subr.mxu0 0.0
    %v524 = vand.u32 %v51, 4294901760
    %525 = vmatpush1.msra.mxu0 %v524
    %526 = vmatprep.subr.mxu0 0.0
    %527 = vmatpush1.msra.mxu0 0.0
    %528 = vmatprep.subr.mxu0 0.0
    %529 = vmatpush1.msra.mxu0 0.0
    %530 = vmatprep.subr.mxu0 0.0
    %531 = vmatpush1.msra.mxu0 0.0
    %532 = vmatprep.subr.mxu0 0.0
    %533 = vmatpush1.msra.mxu0 0.0
    %534 = vmatprep.subr.mxu0 0.0
    %535 = vmatpush1.msra.mxu0 0.0
    %536 = vmatprep.subr.mxu0 0.0
    %537 = vmatpush1.msra.mxu0 0.0
    %538 = vmatprep.subr.mxu0 0.0
    %539 = vmatpush1.msra.mxu0 0.0
    %540 = vmatprep.subr.mxu0 0.0
    %541 = vmatpush1.msra.mxu0 0.0
    %542 = vmatprep.subr.mxu0 0.0
    %543 = vmatpush1.msra.mxu0 0.0
    %544 = vmatprep.subr.mxu0 0.0
    %545 = vmatpush1.msra.mxu0 0.0
    %546 = vmatprep.subr.mxu0 0.0
    %547 = vmatpush1.msra.mxu0 0.0
    %548 = vmatprep.subr.mxu0 0.0
    %549 = vmatpush1.msra.mxu0 0.0
    %550 = vmatprep.subr.mxu0 0.0
    %551 = vmatpush1.msra.mxu0 0.0
    %552 = vmatprep.subr.mxu0 0.0
    %553 = vmatpush1.msra.mxu0 0.0
    %554 = vmatprep.subr.mxu0 0.0
    %555 = vmatpush1.msra.mxu0 0.0
    %556 = vmatprep.subr.mxu0 0.0
    %557 = vmatpush1.msra.mxu0 0.0
    %558 = vmatprep.subr.mxu0 0.0
    %559 = vmatpush1.msra.mxu0 0.0
    %560 = vmatprep.subr.mxu0 0.0
    %561 = vmatpush1.msra.mxu0 0.0
    %562 = vmatprep.subr.mxu0 0.0
    %563 = vmatpush1.msra.mxu0 0.0
    %564 = vmatprep.subr.mxu0 0.0
    %565 = vmatpush1.msra.mxu0 0.0
    %566 = vmatprep.subr.mxu0 0.0
    %567 = vmatpush1.msra.mxu0 0.0
    %568 = vmatprep.subr.mxu0 0.0
    %569 = vmatpush1.msra.mxu0 0.0
    %570 = vmatprep.subr.mxu0 0.0
    %571 = vmatpush1.msra.mxu0 0.0
    %572 = vmatprep.subr.mxu0 0.0
    %573 = vmatpush1.msra.mxu0 0.0
    %574 = vmatprep.subr.mxu0 0.0
    %575 = vmatpush1.msra.mxu0 0.0
    %576 = vmatprep.subr.mxu0 0.0
    %577 = vmatpush1.msra.mxu0 0.0
    %578 = vmatprep.subr.mxu0 0.0
    %579 = vmatpush1.msra.mxu0 0.0
    %580 = vmatprep.subr.mxu0 0.0
    %581 = vmatpush1.msra.mxu0 0.0
    %582 = vmatprep.mubr.f32.mxu0 0.0
    %v583 = vand.u32 %v62, 4294901760
    %584 = vmatmul.mubr.f32.gmra.mrb[0].mxu0 %v583
    %v585 = vpop.f32.mrb[0].mxu0
    %v586 = vadd.f32 %v505, %v585
    %v587 = vpop.f32.mrb[0].mxu0
    %588 = vmatprep.mubr.f32.mxu0 0.0
    %v589 = vand.u32 %v65, 4294901760
    %590 = vmatmul.mubr.f32.gmra.mrb[0].mxu0 %v589
    %v591 = vpop.f32.mrb[0].mxu0
    %v592 = vadd.f32 %v511, %v591
    %v593 = vpop.f32.mrb[0].mxu0
    %594 = vdwg.mxu0
    %v595 = vtanh.pop %v586
    %v596 = vtanh.pop %v592
    %v598 = vlaneseq
    %v599 = vshrl.u32 %v598, 7
    %v600 = vsub.s32 0, %v599
    %v601 = vrot.slane %v53, %v600
    %v603 = vmul.f32 %v595, %v601
    %v604 = vmul.f32 %v596, %v601
    %v605 = vsel %vm60, %v603, 0.0
    %606 = vadd.xlane.f32.xlu0 %v605
    %v607 = vpop.xlane.xlu0 %606
    %v608 = vsel %vm60, %v604, 0.0
    %609 = vadd.xlane.f32.xlu0 %v608
    %v610 = vpop.xlane.xlu0 %609
    %v613 = vlaneseq
    %v614 = vand.u32 %v613, 127
    %v615 = vlaneseq
    %v616 = vshrl.u32 %v615, 7
    %v617 = vsub.s32 %v614, %v616
    %v618 = vrot.slane %v607, %v617
    %v619 = vlaneseq
    %v620 = vshrl.u32 %v619, 7
    %v621 = vsub.s32 %v614, %v620
    %v622 = vrot.slane %v610, %v621
    %vm623 = vcmask 1041409
    %v624 = vsel %vm623, %v622, %v618
    %vm626 = vcmask 58368
    %v627 = vsel %vm626, %v624, -inf
    %628 = vmax.xlane.f32.xlu0 %v627
    %v629 = vpop.xlane.xlu0 %628
    %v631 = vlaneseq
    %v632 = vshrl.u32 %v631, 7
    %v633 = vsub.s32 0, %v632
    %v634 = vrot.slane %v629, %v633
    %v635 = vlaneseq
    %v636 = vshrl.u32 %v635, 7
    %v637 = vsub.s32 1, %v636
    %v638 = vrot.slane %v629, %v637
    %v641 = vsub.f32 %v607, %v634
    %v642 = vsub.f32 %v610, %v638
    %v643 = vmul.f32 %v641, 1.442695
    %v644 = vpow.pop %v643
    %v645 = vmul.f32 %v642, 1.442695
    %v646 = vpow.pop %v645
    %649 = vset.pattern.permute.xlu0 0
    %650 = vperm.xlu0 %649, %v644
    %v651 = vpop.permute.xlu0 %650
    %652 = vset.pattern.permute.xlu0 0
    %653 = vperm.xlu0 %652, %v646
    %v654 = vpop.permute.xlu0 %653
    %v655 = vlaneseq
    %v656 = vshrl.u32 %v655, 7
    %v657 = vsub.s32 %v614, %v656
    %v658 = vrot.slane %v651, %v657
    %v659 = vlaneseq
    %v660 = vshrl.u32 %v659, 7
    %v661 = vsub.s32 %v614, %v660
    %v662 = vrot.slane %v654, %v661
    %v663 = vsel %vm623, %v662, %v658
    %v665 = vsel %vm626, %v663, 0.0
    %666 = vadd.xlane.f32.xlu0 %v665
    %v667 = vpop.xlane.xlu0 %666
    %v669 = vlaneseq
    %v670 = vshrl.u32 %v669, 7
    %v671 = vsub.s32 0, %v670
    %v672 = vrot.slane %v667, %v671
    %v673 = vlaneseq
    %v674 = vshrl.u32 %v673, 7
    %v675 = vsub.s32 1, %v674
    %v676 = vrot.slane %v667, %v675
    %v679 = vrcp.pop %v672
    %v680 = vmul.f32 %v644, %v679
    %v681 = vrcp.pop %v676
    %v682 = vmul.f32 %v646, %v681
    %684 = vset.pattern.permute.xlu0 0
    %685 = vperm.xlu0 %684, %v680
    %v686 = vpop.permute.xlu0 %685
    %689 = vset.pattern.permute.xlu0 0
    %690 = vperm.xlu0 %689, %v682
    %v691 = vpop.permute.xlu0 %690
    %v693 = vmul.f32 %v46, %v686
    %v694 = vmul.f32 %v47, %v691
    %v695 = vsel %vm60, %v693, 0.0
    %v696 = vrot.slane %v695, 4
    %v697 = vadd.f32 %v695, %v696
    %v698 = vrot.slane %v697, 2
    %v699 = vadd.f32 %v697, %v698
    %v700 = vrot.slane %v699, 1
    %v701 = vadd.f32 %v699, %v700
    %v702 = vsel %vm60, %v694, 0.0
    %v703 = vrot.slane %v702, 4
    %v704 = vadd.f32 %v702, %v703
    %v705 = vrot.slane %v704, 2
    %v706 = vadd.f32 %v704, %v705
    %v707 = vrot.slane %v706, 1
    %v708 = vadd.f32 %v706, %v707
    %v711 = vsel %vm623, %v708, %v701
    %vm713 = vcmask 254976
    %714 = vst.msk [vmem:[#allocation7] sm:$0x3] %vm713, %v711
    // Predicated region
    $region26: #{tpu_custom_call.1} parent=1 // pred_check
      _
    $region27: #{tpu_custom_call.1} parent=1 // pred_check_branch
      %716 = sbr.rel (0) target = $region29
    $region28: #{tpu_custom_call.1} parent=1 // pred_region
      %s718 = ssub.s32 32, 32
      %719 = vsyncadd [#allocation4], %s718
      %s721 = sshll.u32 [#allocation7], 4
      %s722 = int_to_ptr.vmem [resolvable:$true] %s721
      %724 = dma.vmem_to_hbm [thread:$0]  %s722, 32, %s4, [#allocation4]
    $region29: #{tpu_custom_call.1} parent=1 // pred_fallthru
      _
    // Predicated region
    $region30: #{tpu_custom_call.1} parent=1 // pred_check
      _
    $region31: #{tpu_custom_call.1} parent=1 // pred_check_branch
      %726 = sbr.rel (0) target = $region33
    $region32: #{tpu_custom_call.1} parent=1 // pred_region
      %727 = dma.done [#allocation4], 32
    $region33: #{tpu_custom_call.1} parent=1 // pred_fallthru
      _
    %728 = vsyncpa [#allocation3], 1
    %729 = vsyncpa [#allocation6], 1
    %730 = vsyncpa [#allocation4], 1

</llo_original>
